<compile_context>
chip_gen: v6e
topology: v6e:2x2x1
jax: 0.10.0
libtpu: 0.0.40
codegen_flags: <defaults>
</compile_context>

<pallas_src>
from functools import partial

import jax
import jax.numpy as jnp
from jax.experimental import pallas as pl
from jax.experimental.pallas import tpu as pltpu


def _gated_conv_kernel(xpad_ref, a_ref, bias_ref, y_ref, psum_ref, psumsq_ref,
                       *, H, KH, pad, block_n, WC):
    """Fused feat||gate 3x3 conv + sigmoid gating + identity residual for a block of
    images, plus per-grid-step BatchNorm partial sums.

      xpad_ref : (block_n, Hp, W*Cin)     f32, H-padded only, (w, c) packed on lanes
      a_ref    : (KH, W*Cin, 2*W*Cout)    bf16 banded weights (Toeplitz over unpadded W)
      bias_ref : (1, 2*W*Cout)            f32, feat||gate biases tiled over w
      y_ref    : (block_n, H, W*Cout)     f32, gated-conv + residual output
      psum_ref / psumsq_ref : (1, W*Cout) f32, partial sums over (block, H)
    """
    # Bias folded into the accumulator init — one broadcast, outside all loops.
    bias = jnp.broadcast_to(bias_ref[...], (H, 2 * WC)).astype(jnp.float32)

    # One f32 load per image; residual uses it directly, MXU slices are cast to bf16.
    x_f32 = [xpad_ref[b] for b in range(block_n)]

    # kh outermost so each banded RHS tap is reused for block_n back-to-back MXU pushes
    # (K = W*Cin is lane-aligned, output lanes = 2*W*Cout fills a 256-wide MXU push).
    accs = [bias] * block_n
    for kh in range(KH):
        a_k = a_ref[kh]                                     # (W*Cin, 2*W*Cout) bf16
        for b in range(block_n):
            xs = x_f32[b][kh:kh + H, :].astype(jnp.bfloat16)  # sublane-shifted, lane-dense
            accs[b] = accs[b] + jnp.dot(xs, a_k, preferred_element_type=jnp.float32)

    s_acc = jnp.zeros((1, WC), jnp.float32)
    ss_acc = jnp.zeros((1, WC), jnp.float32)
    for b in range(block_n):
        feat = accs[b][:, :WC]
        gate = accs[b][:, WC:]
        y = feat * jax.nn.sigmoid(gate)                     # conv_activation=None
        # Identity residual (stride=1, Cin == Cout): full-lane centre rows of the slab.
        y = y + x_f32[b][pad:pad + H, :]
        y_ref[b] = y
        s_acc = s_acc + jnp.sum(y, axis=0, keepdims=True)
        ss_acc = ss_acc + jnp.sum(y * y, axis=0, keepdims=True)

    psum_ref[...] = s_acc
    psumsq_ref[...] = ss_acc


def _build_banded_weights(wf, wg, W, pad, dtype=jnp.bfloat16):
    """OIHW conv weights -> (KH, W*Cin, 2*W*Cout) banded (Toeplitz-over-unpadded-W)
    matrices. Out-of-range W taps are zeroed inside the band so the kernel input needs
    no W padding and K = W*Cin stays a clean multiple of 128."""
    Cout, Cin, KH, KW = wf.shape
    wk_f = jnp.transpose(wf, (2, 3, 1, 0)).astype(jnp.float32)   # (KH, KW, Cin, Cout)
    wk_g = jnp.transpose(wg, (2, 3, 1, 0)).astype(jnp.float32)
    # S[kw, w_out, w_in] = 1 iff w_in == w_out + kw - pad (never true outside [0, W)).
    src = jnp.arange(W)[None, :, None] + jnp.arange(KW)[:, None, None] - pad   # (KW, W, 1)
    S = (jnp.arange(W)[None, None, :] == src).astype(jnp.float32)              # (KW, W, W)

    def band(wk):
        A = jnp.einsum('kwp,hkio->hpiwo', S, wk)             # (KH, W_in, Cin, W_out, Cout)
        return A.reshape(KH, W * Cin, W * Cout)

    return jnp.concatenate([band(wk_f), band(wk_g)], axis=-1).astype(dtype)


def gated_conv_layer_packed(xpad, a, bias_row, *, H, W, C, pad=1, eps=1e-5, block_n=None):
    """Packed-layout op.  xpad: (N, H+2*pad, W*C) f32 with (w, c) packed on lanes,
    a: (KH, W*C, 2*W*C) bf16 banded weights, bias_row: (1, 2*W*C) f32.
    Returns the BatchNorm+ReLU output in the same packed (N, H, W*C) layout."""
    N, Hp, K = xpad.shape
    KH = a.shape[0]
    WC = W * C
    assert K == W * C and Hp == H + 2 * pad

    if block_n is None:
        # Batch a few images per grid step: amortizes the ~0.35 us per-step overhead and
        # issues back-to-back MXU pushes (M = H rows alone underfills the MXU). Cap at 4
        # so larger batches keep >=2 "parallel" steps (v7x: 2 TensorCores) and live
        # vregs stay modest.
        block_n = next(b for b in (4, 2, 1) if b <= N and N % b == 0)
    assert N % block_n == 0
    G = N // block_n

    kernel = partial(_gated_conv_kernel, H=H, KH=KH, pad=pad, block_n=block_n, WC=WC)

    flops = 2 * N * KH * H * K * (2 * WC) + 8 * N * H * WC
    bytes_accessed = (xpad.size * 4 + a.size * 2 + bias_row.size * 4
                      + N * H * WC * 4 + 2 * G * WC * 4)
    cost = pl.CostEstimate(flops=flops, transcendentals=N * H * WC,
                           bytes_accessed=bytes_accessed)

    y, psum, psumsq = pl.pallas_call(
        kernel,
        out_shape=(jax.ShapeDtypeStruct((N, H, WC), jnp.float32),
                   jax.ShapeDtypeStruct((G, 1, WC), jnp.float32),
                   jax.ShapeDtypeStruct((G, 1, WC), jnp.float32)),
        grid=(G,),
        in_specs=[pl.BlockSpec((block_n, Hp, K), lambda g: (g, 0, 0)),
                  pl.BlockSpec((KH, K, 2 * WC), lambda g: (0, 0, 0)),    # grid-invariant
                  pl.BlockSpec((1, 2 * WC), lambda g: (0, 0))],          # grid-invariant
        out_specs=(pl.BlockSpec((block_n, H, WC), lambda g: (g, 0, 0)),
                   pl.BlockSpec((None, 1, WC), lambda g: (g, 0, 0)),
                   pl.BlockSpec((None, 1, WC), lambda g: (g, 0, 0))),
        compiler_params=pltpu.CompilerParams(
            dimension_semantics=("parallel",),
            vmem_limit_bytes=32 * 1024 * 1024),
        cost_estimate=cost,
    )(xpad, a, bias_row)

    # Global BatchNorm statistics: tiny per-channel reduction + fused normalize/ReLU in
    # plain XLA (second pallas_call removed — launch + an HBM round trip of y cost more
    # than one FMA at these sizes).
    cnt = N * H * W
    s = psum.reshape(-1, W, C).sum(axis=(0, 1))
    ss = psumsq.reshape(-1, W, C).sum(axis=(0, 1))
    mean = s / cnt
    # TODO(synk): E[y^2]-E[y]^2 in f32 is fine at this activation scale; switch to a
    # centered second pass if mean^2 >> var ever holds.
    var = jnp.maximum(ss / cnt - mean * mean, 0.0)          # biased variance (BN training)
    rs = jax.lax.rsqrt(var + eps)
    scale = jnp.tile(rs, W).reshape(1, 1, WC)               # broadcast to packed (w, c) lanes
    shift = jnp.tile(-mean * rs, W).reshape(1, 1, WC)
    return jnp.maximum(y * scale + shift, 0.0)


def gated_conv_layer(x_nchw, wf, bf, wg, bg, *, pad=1, eps=1e-5):
    """NCHW boundary wrapper (PyTorch parity).
    x_nchw: (N, Cin, H, W); wf/wg: (Cout, Cin, KH, KW) torch layout; bf/bg: (Cout,)."""
    N, Cin, H, W = x_nchw.shape
    Cout = wf.shape[0]
    assert Cin == Cout, "identity-residual path requires Cin == Cout (stride=1)"
    WC = W * Cout

    # Layout plumbing kept outside the kernel only for NCHW parity with PyTorch.
    # TODO(synk): in a real pipeline call gated_conv_layer_packed directly and keep the
    # packed (N, H+2*pad, W*C) layout across layers to avoid these HBM transposes.
    x_nhwc = jnp.transpose(x_nchw, (0, 2, 3, 1)).astype(jnp.float32)
    xpad = jnp.pad(x_nhwc, ((0, 0), (pad, pad), (0, 0), (0, 0))).reshape(N, H + 2 * pad, WC)

    a = _build_banded_weights(wf, wg, W, pad)                # (KH, W*Cin, 2*W*Cout) bf16
    bias_row = jnp.concatenate([jnp.tile(bf.astype(jnp.float32), W),
                                jnp.tile(bg.astype(jnp.float32), W)]).reshape(1, 2 * WC)

    out_packed = gated_conv_layer_packed(xpad, a, bias_row, H=H, W=W, C=Cout,
                                         pad=pad, eps=eps)
    return jnp.transpose(out_packed.reshape(N, H, W, Cout), (0, 3, 1, 2))   # back to NCHW


def reference(x, wf, bf, wg, bg, eps=1e-5):
    """Plain-JAX reference mirroring the PyTorch forward (NCHW)."""
    dn = jax.lax.conv_dimension_numbers(x.shape, wf.shape, ("NCHW", "OIHW", "NCHW"))
    feat = jax.lax.conv_general_dilated(x, wf, (1, 1), [(1, 1), (1, 1)],
                                        dimension_numbers=dn) + bf[None, :, None, None]
    gate = jax.lax.conv_general_dilated(x, wg, (1, 1), [(1, 1), (1, 1)],
                                        dimension_numbers=dn) + bg[None, :, None, None]
    y = feat * jax.nn.sigmoid(gate) + x
    mean = jnp.mean(y, axis=(0, 2, 3), keepdims=True)
    var = jnp.mean((y - mean) ** 2, axis=(0, 2, 3), keepdims=True)
    y = (y - mean) / jnp.sqrt(var + eps)
    return jnp.maximum(y, 0.0)


if __name__ == "__main__":
    # Cin == Cout so the residual path is identity; W * C = 128 -> fully lane-dense.
    N, C, H, W = 2, 8, 16, 16
    key = jax.random.PRNGKey(0)
    k1, k2, k3, k4, k5 = jax.random.split(key, 5)

    wf = 0.1 * jax.random.normal(k1, (C, C, 3, 3), jnp.float32)
    bf = 0.1 * jax.random.normal(k2, (C,), jnp.float32)
    wg = 0.1 * jax.random.normal(k3, (C, C, 3, 3), jnp.float32)
    bg = 0.1 * jax.random.normal(k4, (C,), jnp.float32)
    x = jax.random.normal(k5, (N, C, H, W), jnp.float32)

    out = jax.block_until_ready(gated_conv_layer(x, wf, bf, wg, bg))
    ref = jax.block_until_ready(reference(x, wf, bf, wg, bg))

    assert out.shape == (N, C, H, W)
    err = jnp.max(jnp.abs(out - ref))
    # bf16 MXU operands (f32 accumulation): tolerance loosened from 1e-4 per review.
    assert jnp.allclose(out, ref, atol=2e-2, rtol=2e-2), f"max abs err {err}"

    print("KERNEL_OK")
</pallas_src>

<mosaic_0001>
module attributes {stable_mosaic.version = 11 : i64} {
  func.func @_gated_conv_kernel(%arg0: i32, %arg1: memref<2x18x128xf32, #tpu.memory_space<vmem>>, %arg2: memref<3x128x256xbf16, #tpu.memory_space<vmem>>, %arg3: memref<1x256xf32, #tpu.memory_space<vmem>>, %arg4: memref<2x16x128xf32, #tpu.memory_space<vmem>>, %arg5: memref<1x1x128xf32, #tpu.memory_space<vmem>>, %arg6: memref<1x1x128xf32, #tpu.memory_space<vmem>>) attributes {dimension_semantics = [#tpu.dimension_semantics<parallel>], iteration_bounds = array<i64: 1>, scalar_prefetch = 0 : i64, scratch_operands = 0 : i64, tpu.core_type = #tpu.core_type<tc>, window_params = [{transform_indices = @transform_0, window_bounds = array<i64: 2, 18, 128>}, {pipeline_mode = #tpu.pipeline_mode<synchronous>, transform_indices = @transform_1, window_bounds = array<i64: 3, 128, 256>}, {pipeline_mode = #tpu.pipeline_mode<synchronous>, transform_indices = @transform_2, window_bounds = array<i64: 1, 256>}, {transform_indices = @transform_3, window_bounds = array<i64: 2, 16, 128>}, {transform_indices = @transform_4, window_bounds = array<i64: 1, 1, 128>}, {transform_indices = @transform_5, window_bounds = array<i64: 1, 1, 128>}]} {
    %c0 = arith.constant 0 : index
    %c0_0 = arith.constant 0 : index
    %0 = vector.load %arg3[%c0, %c0_0] : memref<1x256xf32, #tpu.memory_space<vmem>>, vector<1x256xf32>
    %1 = vector.shape_cast %0 : vector<1x256xf32> to vector<1x256xf32>
    %2 = vector.broadcast %1 : vector<1x256xf32> to vector<16x256xf32>
    %c0_1 = arith.constant 0 : index
    %c0_2 = arith.constant 0 : index
    %c0_3 = arith.constant 0 : index
    %3 = vector.load %arg1[%c0_1, %c0_2, %c0_3] : memref<2x18x128xf32, #tpu.memory_space<vmem>>, vector<1x18x128xf32>
    %4 = vector.shape_cast %3 : vector<1x18x128xf32> to vector<18x128xf32>
    %c1 = arith.constant 1 : index
    %c0_4 = arith.constant 0 : index
    %c0_5 = arith.constant 0 : index
    %5 = vector.load %arg1[%c1, %c0_4, %c0_5] : memref<2x18x128xf32, #tpu.memory_space<vmem>>, vector<1x18x128xf32>
    %6 = vector.shape_cast %5 : vector<1x18x128xf32> to vector<18x128xf32>
    %c0_6 = arith.constant 0 : index
    %c0_7 = arith.constant 0 : index
    %c0_8 = arith.constant 0 : index
    %7 = vector.load %arg2[%c0_6, %c0_7, %c0_8] : memref<3x128x256xbf16, #tpu.memory_space<vmem>>, vector<1x128x256xbf16>
    %8 = vector.shape_cast %7 : vector<1x128x256xbf16> to vector<128x256xbf16>
    %9 = vector.extract_strided_slice %4 {offsets = [0, 0], sizes = [16, 128], strides = [1, 1]} : vector<18x128xf32> to vector<16x128xf32>
    %10 = arith.truncf %9 : vector<16x128xf32> to vector<16x128xbf16>
    %cst = arith.constant dense<0.000000e+00> : vector<16x256xf32>
    %11 = tpu.matmul %10, %8, %cst {dimension_numbers = #tpu.dot_dimension_numbers<[1], [0], [0], [1], [0, 0, 1, 1], [], []>} : vector<16x128xbf16>, vector<128x256xbf16>, vector<16x256xf32> -> vector<16x256xf32>
    %12 = arith.addf %2, %11 : vector<16x256xf32>
    %13 = vector.extract_strided_slice %6 {offsets = [0, 0], sizes = [16, 128], strides = [1, 1]} : vector<18x128xf32> to vector<16x128xf32>
    %14 = arith.truncf %13 : vector<16x128xf32> to vector<16x128xbf16>
    %cst_9 = arith.constant dense<0.000000e+00> : vector<16x256xf32>
    %15 = tpu.matmul %14, %8, %cst_9 {dimension_numbers = #tpu.dot_dimension_numbers<[1], [0], [0], [1], [0, 0, 1, 1], [], []>} : vector<16x128xbf16>, vector<128x256xbf16>, vector<16x256xf32> -> vector<16x256xf32>
    %16 = arith.addf %2, %15 : vector<16x256xf32>
    %c1_10 = arith.constant 1 : index
    %c0_11 = arith.constant 0 : index
    %c0_12 = arith.constant 0 : index
    %17 = vector.load %arg2[%c1_10, %c0_11, %c0_12] : memref<3x128x256xbf16, #tpu.memory_space<vmem>>, vector<1x128x256xbf16>
    %18 = vector.shape_cast %17 : vector<1x128x256xbf16> to vector<128x256xbf16>
    %19 = vector.extract_strided_slice %4 {offsets = [1, 0], sizes = [16, 128], strides = [1, 1]} : vector<18x128xf32> to vector<16x128xf32>
    %20 = arith.truncf %19 : vector<16x128xf32> to vector<16x128xbf16>
    %cst_13 = arith.constant dense<0.000000e+00> : vector<16x256xf32>
    %21 = tpu.matmul %20, %18, %cst_13 {dimension_numbers = #tpu.dot_dimension_numbers<[1], [0], [0], [1], [0, 0, 1, 1], [], []>} : vector<16x128xbf16>, vector<128x256xbf16>, vector<16x256xf32> -> vector<16x256xf32>
    %22 = arith.addf %12, %21 : vector<16x256xf32>
    %23 = vector.extract_strided_slice %6 {offsets = [1, 0], sizes = [16, 128], strides = [1, 1]} : vector<18x128xf32> to vector<16x128xf32>
    %24 = arith.truncf %23 : vector<16x128xf32> to vector<16x128xbf16>
    %cst_14 = arith.constant dense<0.000000e+00> : vector<16x256xf32>
    %25 = tpu.matmul %24, %18, %cst_14 {dimension_numbers = #tpu.dot_dimension_numbers<[1], [0], [0], [1], [0, 0, 1, 1], [], []>} : vector<16x128xbf16>, vector<128x256xbf16>, vector<16x256xf32> -> vector<16x256xf32>
    %26 = arith.addf %16, %25 : vector<16x256xf32>
    %c2 = arith.constant 2 : index
    %c0_15 = arith.constant 0 : index
    %c0_16 = arith.constant 0 : index
    %27 = vector.load %arg2[%c2, %c0_15, %c0_16] : memref<3x128x256xbf16, #tpu.memory_space<vmem>>, vector<1x128x256xbf16>
    %28 = vector.shape_cast %27 : vector<1x128x256xbf16> to vector<128x256xbf16>
    %29 = vector.extract_strided_slice %4 {offsets = [2, 0], sizes = [16, 128], strides = [1, 1]} : vector<18x128xf32> to vector<16x128xf32>
    %30 = arith.truncf %29 : vector<16x128xf32> to vector<16x128xbf16>
    %cst_17 = arith.constant dense<0.000000e+00> : vector<16x256xf32>
    %31 = tpu.matmul %30, %28, %cst_17 {dimension_numbers = #tpu.dot_dimension_numbers<[1], [0], [0], [1], [0, 0, 1, 1], [], []>} : vector<16x128xbf16>, vector<128x256xbf16>, vector<16x256xf32> -> vector<16x256xf32>
    %32 = arith.addf %22, %31 : vector<16x256xf32>
    %33 = vector.extract_strided_slice %6 {offsets = [2, 0], sizes = [16, 128], strides = [1, 1]} : vector<18x128xf32> to vector<16x128xf32>
    %34 = arith.truncf %33 : vector<16x128xf32> to vector<16x128xbf16>
    %cst_18 = arith.constant dense<0.000000e+00> : vector<16x256xf32>
    %35 = tpu.matmul %34, %28, %cst_18 {dimension_numbers = #tpu.dot_dimension_numbers<[1], [0], [0], [1], [0, 0, 1, 1], [], []>} : vector<16x128xbf16>, vector<128x256xbf16>, vector<16x256xf32> -> vector<16x256xf32>
    %36 = arith.addf %26, %35 : vector<16x256xf32>
    %cst_19 = arith.constant 0.000000e+00 : f32
    %37 = vector.broadcast %cst_19 : f32 to vector<1x128xf32>
    %cst_20 = arith.constant 0.000000e+00 : f32
    %38 = vector.broadcast %cst_20 : f32 to vector<1x128xf32>
    %39 = vector.extract_strided_slice %32 {offsets = [0, 0], sizes = [16, 128], strides = [1, 1]} : vector<16x256xf32> to vector<16x128xf32>
    %40 = vector.extract_strided_slice %32 {offsets = [0, 128], sizes = [16, 128], strides = [1, 1]} : vector<16x256xf32> to vector<16x128xf32>
    %41 = arith.negf %40 : vector<16x128xf32>
    %42 = math.exp %41 : vector<16x128xf32>
    %cst_21 = arith.constant 1.000000e+00 : f32
    %43 = vector.broadcast %cst_21 : f32 to vector<16x128xf32>
    %44 = arith.addf %43, %42 : vector<16x128xf32>
    %45 = arith.divf %43, %44 : vector<16x128xf32>
    %46 = arith.mulf %39, %45 : vector<16x128xf32>
    %47 = vector.extract_strided_slice %4 {offsets = [1, 0], sizes = [16, 128], strides = [1, 1]} : vector<18x128xf32> to vector<16x128xf32>
    %48 = arith.addf %46, %47 : vector<16x128xf32>
    %c0_22 = arith.constant 0 : index
    %c0_23 = arith.constant 0 : index
    %c0_24 = arith.constant 0 : index
    %49 = vector.load %arg4[%c0_22, %c0_23, %c0_24] : memref<2x16x128xf32, #tpu.memory_space<vmem>>, vector<1x16x128xf32>
    %50 = vector.shape_cast %49 : vector<1x16x128xf32> to vector<16x128xf32>
    %51 = vector.shape_cast %48 : vector<16x128xf32> to vector<1x16x128xf32>
    tpu.vector_store %arg4[%c0_22, %c0_23, %c0_24], %51 {strides = array<i32>} : memref<2x16x128xf32, #tpu.memory_space<vmem>>, vector<1x16x128xf32>,
    %cst_25 = arith.constant dense<0.000000e+00> : vector<128xf32>
    %52 = vector.multi_reduction <add>, %48, %cst_25 [0] : vector<16x128xf32> to vector<128xf32>
    %53 = vector.shape_cast %52 : vector<128xf32> to vector<1x128xf32>
    %54 = arith.addf %37, %53 : vector<1x128xf32>
    %55 = arith.mulf %48, %48 : vector<16x128xf32>
    %cst_26 = arith.constant dense<0.000000e+00> : vector<128xf32>
    %56 = vector.multi_reduction <add>, %55, %cst_26 [0] : vector<16x128xf32> to vector<128xf32>
    %57 = vector.shape_cast %56 : vector<128xf32> to vector<1x128xf32>
    %58 = arith.addf %38, %57 : vector<1x128xf32>
    %59 = vector.extract_strided_slice %36 {offsets = [0, 0], sizes = [16, 128], strides = [1, 1]} : vector<16x256xf32> to vector<16x128xf32>
    %60 = vector.extract_strided_slice %36 {offsets = [0, 128], sizes = [16, 128], strides = [1, 1]} : vector<16x256xf32> to vector<16x128xf32>
    %61 = arith.negf %60 : vector<16x128xf32>
    %62 = math.exp %61 : vector<16x128xf32>
    %cst_27 = arith.constant 1.000000e+00 : f32
    %63 = vector.broadcast %cst_27 : f32 to vector<16x128xf32>
    %64 = arith.addf %63, %62 : vector<16x128xf32>
    %65 = arith.divf %63, %64 : vector<16x128xf32>
    %66 = arith.mulf %59, %65 : vector<16x128xf32>
    %67 = vector.extract_strided_slice %6 {offsets = [1, 0], sizes = [16, 128], strides = [1, 1]} : vector<18x128xf32> to vector<16x128xf32>
    %68 = arith.addf %66, %67 : vector<16x128xf32>
    %c1_28 = arith.constant 1 : index
    %c0_29 = arith.constant 0 : index
    %c0_30 = arith.constant 0 : index
    %69 = vector.load %arg4[%c1_28, %c0_29, %c0_30] : memref<2x16x128xf32, #tpu.memory_space<vmem>>, vector<1x16x128xf32>
    %70 = vector.shape_cast %69 : vector<1x16x128xf32> to vector<16x128xf32>
    %71 = vector.shape_cast %68 : vector<16x128xf32> to vector<1x16x128xf32>
    tpu.vector_store %arg4[%c1_28, %c0_29, %c0_30], %71 {strides = array<i32>} : memref<2x16x128xf32, #tpu.memory_space<vmem>>, vector<1x16x128xf32>,
    %cst_31 = arith.constant dense<0.000000e+00> : vector<128xf32>
    %72 = vector.multi_reduction <add>, %68, %cst_31 [0] : vector<16x128xf32> to vector<128xf32>
    %73 = vector.shape_cast %72 : vector<128xf32> to vector<1x128xf32>
    %74 = arith.addf %54, %73 : vector<1x128xf32>
    %75 = arith.mulf %68, %68 : vector<16x128xf32>
    %cst_32 = arith.constant dense<0.000000e+00> : vector<128xf32>
    %76 = vector.multi_reduction <add>, %75, %cst_32 [0] : vector<16x128xf32> to vector<128xf32>
    %77 = vector.shape_cast %76 : vector<128xf32> to vector<1x128xf32>
    %78 = arith.addf %58, %77 : vector<1x128xf32>
    %c0_33 = arith.constant 0 : index
    %c0_34 = arith.constant 0 : index
    %c0_35 = arith.constant 0 : index
    %79 = vector.load %arg5[%c0_33, %c0_34, %c0_35] : memref<1x1x128xf32, #tpu.memory_space<vmem>>, vector<1x1x128xf32>
    %80 = vector.shape_cast %79 : vector<1x1x128xf32> to vector<1x128xf32>
    %81 = vector.shape_cast %74 : vector<1x128xf32> to vector<1x1x128xf32>
    tpu.vector_store %arg5[%c0_33, %c0_34, %c0_35], %81 {strides = array<i32>} : memref<1x1x128xf32, #tpu.memory_space<vmem>>, vector<1x1x128xf32>,
    %c0_36 = arith.constant 0 : index
    %c0_37 = arith.constant 0 : index
    %c0_38 = arith.constant 0 : index
    %82 = vector.load %arg6[%c0_36, %c0_37, %c0_38] : memref<1x1x128xf32, #tpu.memory_space<vmem>>, vector<1x1x128xf32>
    %83 = vector.shape_cast %82 : vector<1x1x128xf32> to vector<1x128xf32>
    %84 = vector.shape_cast %78 : vector<1x128xf32> to vector<1x1x128xf32>
    tpu.vector_store %arg6[%c0_36, %c0_37, %c0_38], %84 {strides = array<i32>} : memref<1x1x128xf32, #tpu.memory_space<vmem>>, vector<1x1x128xf32>,
    return
  }
  func.func @transform_0(%arg0: i32) -> (i32, i32, i32) {
    %c0_i32 = arith.constant 0 : i32
    %c0_i32_0 = arith.constant 0 : i32
    %c0_i32_1 = arith.constant 0 : i32
    return %arg0, %c0_i32, %c0_i32_0 : i32, i32, i32
  }
  func.func @transform_1(%arg0: i32) -> (i32, i32, i32) {
    %c0_i32 = arith.constant 0 : i32
    %c0_i32_0 = arith.constant 0 : i32
    %c0_i32_1 = arith.constant 0 : i32
    %c0_i32_2 = arith.constant 0 : i32
    return %c0_i32, %c0_i32_0, %c0_i32_1 : i32, i32, i32
  }
  func.func @transform_2(%arg0: i32) -> (i32, i32) {
    %c0_i32 = arith.constant 0 : i32
    %c0_i32_0 = arith.constant 0 : i32
    %c0_i32_1 = arith.constant 0 : i32
    return %c0_i32, %c0_i32_0 : i32, i32
  }
  func.func @transform_3(%arg0: i32) -> (i32, i32, i32) {
    %c0_i32 = arith.constant 0 : i32
    %c0_i32_0 = arith.constant 0 : i32
    %c0_i32_1 = arith.constant 0 : i32
    return %arg0, %c0_i32, %c0_i32_0 : i32, i32, i32
  }
  func.func @transform_4(%arg0: i32) -> (i32, i32, i32) {
    %c0_i32 = arith.constant 0 : i32
    %c0_i32_0 = arith.constant 0 : i32
    %c0_i32_1 = arith.constant 0 : i32
    return %arg0, %c0_i32, %c0_i32_0 : i32, i32, i32
  }
  func.func @transform_5(%arg0: i32) -> (i32, i32, i32) {
    %c0_i32 = arith.constant 0 : i32
    %c0_i32_0 = arith.constant 0 : i32
    %c0_i32_1 = arith.constant 0 : i32
    return %arg0, %c0_i32, %c0_i32_0 : i32, i32, i32
  }
}

</mosaic_0001>

<llo_original>
// kernel: tpu_custom_call.1
$region0: #{tpu_custom_call.1}
  #allocation0 [shape = 'u32[]', space=smem, size = 0x4, offset = 0x4, fixed_abs, tag = 'smem constant byte address 0x4 - core index']
  #allocation1 [shape = 'u32[144,128]{1,0:T(1,128)}', space=vmem, size = 0x12000, scoped, tag = 'internal scratch']
  %s0 = inlined_call_operand.vmem [shape: f32[2,18,128], index: 0, kind: input, shape index: {}]
  %s1 = inlined_call_operand.hbm [shape: bf16[3,128,256], index: 1, kind: input, shape index: {}]
  %s2 = inlined_call_operand.vmem [shape: f32[1,256], index: 2, kind: input, shape index: {}]
  %s3 = inlined_call_operand.hbm [shape: f32[2,16,128], index: 3, kind: output, shape index: {0}]
  %s4 = inlined_call_operand.hbm [shape: f32[1,1,128], index: 4, kind: output, shape index: {1}]
  %s5 = inlined_call_operand.hbm [shape: f32[1,1,128], index: 5, kind: output, shape index: {2}]
  %6 = xla_tuple %s3, %s4, %s5
  %s7 = sld [smem:[#allocation0]]
  $region42: #{tpu_custom_call.1} parent=0
    _
  %s9 = ssub.s32 1, %s7
  %s10 = scalar_select 0, %s9, %s7
  $region1: #{tpu_custom_call.1} parent=0
    #allocation2 [shape = 'u8[196608]{0}', space=vmem, size = 0x30000, scoped, tag = 'input window, operand 1, single buffered']
    #allocation3 [shape = 's32[1]{0}', space=sflag, size = 0x4, scoped, tag = 'scoped memory for tpu_custom_call.1']
    #allocation4 [shape = 's32[1]{0}', space=sflag, size = 0x4, scoped, tag = 'scoped memory for tpu_custom_call.1']
    #allocation5 [shape = 'u8[16384]{0}', space=vmem, size = 0x4000, scoped, tag = 'output window, operand 0, single buffered']
    #allocation6 [shape = 'u8[512]{0}', space=vmem, size = 0x400, scoped, tag = 'output window, operand 1, single buffered']
    #allocation7 [shape = 's32[1]{0}', space=sflag, size = 0x4, scoped, tag = 'scoped memory for tpu_custom_call.1']
    #allocation8 [shape = 'u8[512]{0}', space=vmem, size = 0x400, scoped, tag = 'output window, operand 2, single buffered']
    %11 = vsyncpa [#allocation3], 0
    %12 = vsyncpa [#allocation4], 0
    %13 = vsyncpa [#allocation7], 0
    // Predicated region
    $region2: #{tpu_custom_call.1} parent=1 // pred_check
      _
    $region3: #{tpu_custom_call.1} parent=1 // pred_check_branch
      %15 = sbr.rel (0) target = $region5
    $region4: #{tpu_custom_call.1} parent=1 // pred_region
      _
    $region5: #{tpu_custom_call.1} parent=1 // pred_fallthru
      _
    // Predicated region
    $region6: #{tpu_custom_call.1} parent=1 // pred_check
      _
    $region7: #{tpu_custom_call.1} parent=1 // pred_check_branch
      %17 = sbr.rel (0) target = $region9
    $region8: #{tpu_custom_call.1} parent=1 // pred_region
      %s19 = ssub.s32 6144, 6144
      %20 = vsyncadd [#allocation3], %s19
      %s21 = sshll.u32 [#allocation2], 4
      %s22 = int_to_ptr.vmem [resolvable:$true] %s21
      %27 = dma.hbm_to_vmem [thread:$0]  %s1, 6144, %s22, [#allocation3], 128, 128, 8
    $region9: #{tpu_custom_call.1} parent=1 // pred_fallthru
      _
    // Predicated region
    $region10: #{tpu_custom_call.1} parent=1 // pred_check
      _
    $region11: #{tpu_custom_call.1} parent=1 // pred_check_branch
      %29 = sbr.rel (0) target = $region13
    $region12: #{tpu_custom_call.1} parent=1 // pred_region
      _
    $region13: #{tpu_custom_call.1} parent=1 // pred_fallthru
      _
    // Predicated region
    $region14: #{tpu_custom_call.1} parent=1 // pred_check
      _
    $region15: #{tpu_custom_call.1} parent=1 // pred_check_branch
      %31 = sbr.rel (0) target = $region17
    $region16: #{tpu_custom_call.1} parent=1 // pred_region
      %32 = dma.done [#allocation3], 6144
    $region17: #{tpu_custom_call.1} parent=1 // pred_fallthru
      _
    %v34 = vld [vmem:[%s2] sm:$0x3]
    %v36 = vlaneseq
    %v37 = vshrl.u32 %v36, 7
    %v38 = vsub.s32 0, %v37
    %v39 = vrot.slane %v34, %v38
    %v40 = vlaneseq
    %v41 = vshrl.u32 %v40, 7
    %v42 = vsub.s32 1, %v41
    %v43 = vrot.slane %v34, %v42
    %v46 = vld [vmem:[%s0] sm:$0xff]
    %v47 = vld [vmem:[%s0 + $0x8] sm:$0xff]
    %v48 = vld [vmem:[%s0 + $0x10] sm:$0x3]
    %s49 = scalar_lea.vmem %s0, 24
    %v50 = vld [vmem:[%s49] sm:$0xff]
    %v51 = vld [vmem:[%s49 + $0x8] sm:$0xff]
    %v52 = vld [vmem:[%s49 + $0x10] sm:$0x3]
    %v53 = vld [vmem:[#allocation2] sm:$0xff]
    %v54 = vld [vmem:[#allocation2 + $0x8] sm:$0xff]
    %v55 = vld [vmem:[#allocation2 + $0x10] sm:$0xff]
    %v56 = vld [vmem:[#allocation2 + $0x18] sm:$0xff]
    %v57 = vld [vmem:[#allocation2 + $0x20] sm:$0xff]
    %v58 = vld [vmem:[#allocation2 + $0x28] sm:$0xff]
    %v59 = vld [vmem:[#allocation2 + $0x30] sm:$0xff]
    %v60 = vld [vmem:[#allocation2 + $0x38] sm:$0xff]
    %v61 = vld [vmem:[#allocation2 + $0x40] sm:$0xff]
    %v62 = vld [vmem:[#allocation2 + $0x48] sm:$0xff]
    %v63 = vld [vmem:[#allocation2 + $0x50] sm:$0xff]
    %v64 = vld [vmem:[#allocation2 + $0x58] sm:$0xff]
    %v65 = vld [vmem:[#allocation2 + $0x60] sm:$0xff]
    %v66 = vld [vmem:[#allocation2 + $0x68] sm:$0xff]
    %v67 = vld [vmem:[#allocation2 + $0x70] sm:$0xff]
    %v68 = vld [vmem:[#allocation2 + $0x78] sm:$0xff]
    %v69 = vpack.c.bf16 %v47, %v46
    %v86 = vunpack.c.l.b16 %v53
    %v87 = vunpack.c.h.b16 %v53
    %v88 = vunpack.c.l.b16 %v54
    %v89 = vunpack.c.h.b16 %v54
    %v90 = vunpack.c.l.b16 %v55
    %v91 = vunpack.c.h.b16 %v55
    %v92 = vunpack.c.l.b16 %v56
    %v93 = vunpack.c.h.b16 %v56
    %v94 = vunpack.c.l.b16 %v57
    %v95 = vunpack.c.h.b16 %v57
    %v96 = vunpack.c.l.b16 %v58
    %v97 = vunpack.c.h.b16 %v58
    %v98 = vunpack.c.l.b16 %v59
    %v99 = vunpack.c.h.b16 %v59
    %v100 = vunpack.c.l.b16 %v60
    %v101 = vunpack.c.h.b16 %v60
    %v102 = vunpack.c.l.b16 %v61
    %v103 = vunpack.c.h.b16 %v61
    %v104 = vunpack.c.l.b16 %v62
    %v105 = vunpack.c.h.b16 %v62
    %v106 = vunpack.c.l.b16 %v63
    %v107 = vunpack.c.h.b16 %v63
    %v108 = vunpack.c.l.b16 %v64
    %v109 = vunpack.c.h.b16 %v64
    %v110 = vunpack.c.l.b16 %v65
    %v111 = vunpack.c.h.b16 %v65
    %v112 = vunpack.c.l.b16 %v66
    %v113 = vunpack.c.h.b16 %v66
    %v114 = vunpack.c.l.b16 %v67
    %v115 = vunpack.c.h.b16 %v67
    %v116 = vunpack.c.l.b16 %v68
    %v117 = vunpack.c.h.b16 %v68
    %v118 = vpack.c.b16 %v88, %v86
    %v119 = vpack.c.b16 %v89, %v87
    %v120 = vpack.c.b16 %v92, %v90
    %v121 = vpack.c.b16 %v93, %v91
    %v122 = vpack.c.b16 %v96, %v94
    %v123 = vpack.c.b16 %v97, %v95
    %v124 = vpack.c.b16 %v100, %v98
    %v125 = vpack.c.b16 %v101, %v99
    %v126 = vpack.c.b16 %v104, %v102
    %v127 = vpack.c.b16 %v105, %v103
    %v128 = vpack.c.b16 %v108, %v106
    %v129 = vpack.c.b16 %v109, %v107
    %v130 = vpack.c.b16 %v112, %v110
    %v131 = vpack.c.b16 %v113, %v111
    %v132 = vpack.c.b16 %v116, %v114
    %v133 = vpack.c.b16 %v117, %v115
    %150 = vmatprep.subr.bf16.mxu0 %v133
    %151 = vmatpush1.bf16.msra.mxu0 %v132
    %152 = vmatprep.subr.bf16.mxu0 %v131
    %153 = vmatpush1.bf16.msra.mxu0 %v130
    %154 = vmatprep.subr.bf16.mxu0 %v129
    %155 = vmatpush1.bf16.msra.mxu0 %v128
    %156 = vmatprep.subr.bf16.mxu0 %v127
    %157 = vmatpush1.bf16.msra.mxu0 %v126
    %158 = vmatprep.subr.bf16.mxu0 %v125
    %159 = vmatpush1.bf16.msra.mxu0 %v124
    %160 = vmatprep.subr.bf16.mxu0 %v123
    %161 = vmatpush1.bf16.msra.mxu0 %v122
    %162 = vmatprep.subr.bf16.mxu0 %v121
    %163 = vmatpush1.bf16.msra.mxu0 %v120
    %164 = vmatprep.subr.bf16.mxu0 %v119
    %165 = vmatpush1.bf16.msra.mxu0 %v118
    %166 = vmatprep.subr.bf16.mxu0 0
    %167 = vmatpush2.bf16.msra.mxu0 0
    %168 = vmatprep.subr.bf16.mxu0 0
    %169 = vmatpush2.bf16.msra.mxu0 0
    %170 = vmatprep.subr.bf16.mxu0 0
    %171 = vmatpush2.bf16.msra.mxu0 0
    %172 = vmatprep.subr.bf16.mxu0 0
    %173 = vmatpush2.bf16.msra.mxu0 0
    %174 = vmatprep.subr.bf16.mxu0 0
    %175 = vmatpush2.bf16.msra.mxu0 0
    %176 = vmatprep.subr.bf16.mxu0 0
    %177 = vmatpush2.bf16.msra.mxu0 0
    %178 = vmatprep.subr.bf16.mxu0 0
    %179 = vmatpush2.bf16.msra.mxu0 0
    %180 = vmatprep.subr.bf16.mxu0 0
    %181 = vmatpush2.bf16.msra.mxu0 0
    %182 = vmatprep.mubr.bf16.mxu0 0
    %183 = vmatmul.mubr.bf16.gmra.mxu0 %v69
    %v184 = vpop.f32.mrf.mxu0
    %v185 = vadd.f32 0.0, %v184
    %v186 = vpop.f32.mrf.mxu0
    %v187 = vadd.f32 0.0, %v186
    %v188 = vpop.f32.mrf.mxu0
    %v189 = vadd.f32 0.0, %v188
    %v190 = vpop.f32.mrf.mxu0
    %v191 = vadd.f32 0.0, %v190
    %192 = vdwg.mxu0
    %v193 = vadd.f32 %v39, %v185
    %v194 = vadd.f32 %v43, %v187
    %v195 = vadd.f32 %v39, %v189
    %v196 = vadd.f32 %v43, %v191
    %v197 = vpack.c.bf16 %v51, %v50
    %198 = vmatprep.subr.bf16.mxu0 %v133
    %199 = vmatpush1.bf16.msra.mxu0 %v132
    %200 = vmatprep.subr.bf16.mxu0 %v131
    %201 = vmatpush1.bf16.msra.mxu0 %v130
    %202 = vmatprep.subr.bf16.mxu0 %v129
    %203 = vmatpush1.bf16.msra.mxu0 %v128
    %204 = vmatprep.subr.bf16.mxu0 %v127
    %205 = vmatpush1.bf16.msra.mxu0 %v126
    %206 = vmatprep.subr.bf16.mxu0 %v125
    %207 = vmatpush1.bf16.msra.mxu0 %v124
    %208 = vmatprep.subr.bf16.mxu0 %v123
    %209 = vmatpush1.bf16.msra.mxu0 %v122
    %210 = vmatprep.subr.bf16.mxu0 %v121
    %211 = vmatpush1.bf16.msra.mxu0 %v120
    %212 = vmatprep.subr.bf16.mxu0 %v119
    %213 = vmatpush1.bf16.msra.mxu0 %v118
    %214 = vmatprep.subr.bf16.mxu0 0
    %215 = vmatpush2.bf16.msra.mxu0 0
    %216 = vmatprep.subr.bf16.mxu0 0
    %217 = vmatpush2.bf16.msra.mxu0 0
    %218 = vmatprep.subr.bf16.mxu0 0
    %219 = vmatpush2.bf16.msra.mxu0 0
    %220 = vmatprep.subr.bf16.mxu0 0
    %221 = vmatpush2.bf16.msra.mxu0 0
    %222 = vmatprep.subr.bf16.mxu0 0
    %223 = vmatpush2.bf16.msra.mxu0 0
    %224 = vmatprep.subr.bf16.mxu0 0
    %225 = vmatpush2.bf16.msra.mxu0 0
    %226 = vmatprep.subr.bf16.mxu0 0
    %227 = vmatpush2.bf16.msra.mxu0 0
    %228 = vmatprep.subr.bf16.mxu0 0
    %229 = vmatpush2.bf16.msra.mxu0 0
    %230 = vmatprep.mubr.bf16.mxu0 0
    %231 = vmatmul.mubr.bf16.gmra.mxu0 %v197
    %v232 = vpop.f32.mrf.mxu0
    %v233 = vadd.f32 0.0, %v232
    %v234 = vpop.f32.mrf.mxu0
    %v235 = vadd.f32 0.0, %v234
    %v236 = vpop.f32.mrf.mxu0
    %v237 = vadd.f32 0.0, %v236
    %v238 = vpop.f32.mrf.mxu0
    %v239 = vadd.f32 0.0, %v238
    %240 = vdwg.mxu0
    %v241 = vadd.f32 %v39, %v233
    %v242 = vadd.f32 %v43, %v235
    %v243 = vadd.f32 %v39, %v237
    %v244 = vadd.f32 %v43, %v239
    %s245 = scalar_lea.vmem [#allocation2], 128
    %v246 = vld [vmem:[%s245] sm:$0xff]
    %v247 = vld [vmem:[%s245 + $0x8] sm:$0xff]
    %v248 = vld [vmem:[%s245 + $0x10] sm:$0xff]
    %v249 = vld [vmem:[%s245 + $0x18] sm:$0xff]
    %v250 = vld [vmem:[%s245 + $0x20] sm:$0xff]
    %v251 = vld [vmem:[%s245 + $0x28] sm:$0xff]
    %v252 = vld [vmem:[%s245 + $0x30] sm:$0xff]
    %v253 = vld [vmem:[%s245 + $0x38] sm:$0xff]
    %v254 = vld [vmem:[%s245 + $0x40] sm:$0xff]
    %v255 = vld [vmem:[%s245 + $0x48] sm:$0xff]
    %v256 = vld [vmem:[%s245 + $0x50] sm:$0xff]
    %v257 = vld [vmem:[%s245 + $0x58] sm:$0xff]
    %v258 = vld [vmem:[%s245 + $0x60] sm:$0xff]
    %v259 = vld [vmem:[%s245 + $0x68] sm:$0xff]
    %v260 = vld [vmem:[%s245 + $0x70] sm:$0xff]
    %v261 = vld [vmem:[%s245 + $0x78] sm:$0xff]
    %v262 = vpack.c.bf16 %v48, %v48
    %vm263 = vsmask.f32 7424
    %v265 = vshrl.u32 %v69, 16
    %v267 = vshll.u32 %v69, 16
    %v269 = vrot.slane %v267, 1
    %v270 = vor.u32 %v265, %v269
    %v272 = vshll.u32 %v262, 16
    %v274 = vrot.slane %v272, 1
    %v275 = vsel %vm263, %v270, %v274
    %v293 = vunpack.c.l.b16 %v246
    %v294 = vunpack.c.h.b16 %v246
    %v295 = vunpack.c.l.b16 %v247
    %v296 = vunpack.c.h.b16 %v247
    %v297 = vunpack.c.l.b16 %v248
    %v298 = vunpack.c.h.b16 %v248
    %v299 = vunpack.c.l.b16 %v249
    %v300 = vunpack.c.h.b16 %v249
    %v301 = vunpack.c.l.b16 %v250
    %v302 = vunpack.c.h.b16 %v250
    %v303 = vunpack.c.l.b16 %v251
    %v304 = vunpack.c.h.b16 %v251
    %v305 = vunpack.c.l.b16 %v252
    %v306 = vunpack.c.h.b16 %v252
    %v307 = vunpack.c.l.b16 %v253
    %v308 = vunpack.c.h.b16 %v253
    %v309 = vunpack.c.l.b16 %v254
    %v310 = vunpack.c.h.b16 %v254
    %v311 = vunpack.c.l.b16 %v255
    %v312 = vunpack.c.h.b16 %v255
    %v313 = vunpack.c.l.b16 %v256
    %v314 = vunpack.c.h.b16 %v256
    %v315 = vunpack.c.l.b16 %v257
    %v316 = vunpack.c.h.b16 %v257
    %v317 = vunpack.c.l.b16 %v258
    %v318 = vunpack.c.h.b16 %v258
    %v319 = vunpack.c.l.b16 %v259
    %v320 = vunpack.c.h.b16 %v259
    %v321 = vunpack.c.l.b16 %v260
    %v322 = vunpack.c.h.b16 %v260
    %v323 = vunpack.c.l.b16 %v261
    %v324 = vunpack.c.h.b16 %v261
    %v325 = vpack.c.b16 %v295, %v293
    %v326 = vpack.c.b16 %v296, %v294
    %v327 = vpack.c.b16 %v299, %v297
    %v328 = vpack.c.b16 %v300, %v298
    %v329 = vpack.c.b16 %v303, %v301
    %v330 = vpack.c.b16 %v304, %v302
    %v331 = vpack.c.b16 %v307, %v305
    %v332 = vpack.c.b16 %v308, %v306
    %v333 = vpack.c.b16 %v311, %v309
    %v334 = vpack.c.b16 %v312, %v310
    %v335 = vpack.c.b16 %v315, %v313
    %v336 = vpack.c.b16 %v316, %v314
    %v337 = vpack.c.b16 %v319, %v317
    %v338 = vpack.c.b16 %v320, %v318
    %v339 = vpack.c.b16 %v323, %v321
    %v340 = vpack.c.b16 %v324, %v322
    %357 = vmatprep.subr.bf16.mxu0 %v340
    %358 = vmatpush1.bf16.msra.mxu0 %v339
    %359 = vmatprep.subr.bf16.mxu0 %v338
    %360 = vmatpush1.bf16.msra.mxu0 %v337
    %361 = vmatprep.subr.bf16.mxu0 %v336
    %362 = vmatpush1.bf16.msra.mxu0 %v335
    %363 = vmatprep.subr.bf16.mxu0 %v334
    %364 = vmatpush1.bf16.msra.mxu0 %v333
    %365 = vmatprep.subr.bf16.mxu0 %v332
    %366 = vmatpush1.bf16.msra.mxu0 %v331
    %367 = vmatprep.subr.bf16.mxu0 %v330
    %368 = vmatpush1.bf16.msra.mxu0 %v329
    %369 = vmatprep.subr.bf16.mxu0 %v328
    %370 = vmatpush1.bf16.msra.mxu0 %v327
    %371 = vmatprep.subr.bf16.mxu0 %v326
    %372 = vmatpush1.bf16.msra.mxu0 %v325
    %373 = vmatprep.subr.bf16.mxu0 0
    %374 = vmatpush2.bf16.msra.mxu0 0
    %375 = vmatprep.subr.bf16.mxu0 0
    %376 = vmatpush2.bf16.msra.mxu0 0
    %377 = vmatprep.subr.bf16.mxu0 0
    %378 = vmatpush2.bf16.msra.mxu0 0
    %379 = vmatprep.subr.bf16.mxu0 0
    %380 = vmatpush2.bf16.msra.mxu0 0
    %381 = vmatprep.subr.bf16.mxu0 0
    %382 = vmatpush2.bf16.msra.mxu0 0
    %383 = vmatprep.subr.bf16.mxu0 0
    %384 = vmatpush2.bf16.msra.mxu0 0
    %385 = vmatprep.subr.bf16.mxu0 0
    %386 = vmatpush2.bf16.msra.mxu0 0
    %387 = vmatprep.subr.bf16.mxu0 0
    %388 = vmatpush2.bf16.msra.mxu0 0
    %389 = vmatprep.mubr.bf16.mxu0 0
    %390 = vmatmul.mubr.bf16.gmra.mxu0 %v275
    %v391 = vpop.f32.mrf.mxu0
    %v392 = vadd.f32 0.0, %v391
    %v393 = vpop.f32.mrf.mxu0
    %v394 = vadd.f32 0.0, %v393
    %v395 = vpop.f32.mrf.mxu0
    %v396 = vadd.f32 0.0, %v395
    %v397 = vpop.f32.mrf.mxu0
    %v398 = vadd.f32 0.0, %v397
    %399 = vdwg.mxu0
    %v400 = vadd.f32 %v193, %v392
    %v401 = vadd.f32 %v194, %v394
    %v402 = vadd.f32 %v195, %v396
    %v403 = vadd.f32 %v196, %v398
    %v404 = vpack.c.bf16 %v52, %v52
    %v406 = vshrl.u32 %v197, 16
    %v408 = vshll.u32 %v197, 16
    %v410 = vrot.slane %v408, 1
    %v411 = vor.u32 %v406, %v410
    %v413 = vshll.u32 %v404, 16
    %v415 = vrot.slane %v413, 1
    %v416 = vsel %vm263, %v411, %v415
    %418 = vmatprep.subr.bf16.mxu0 %v340
    %419 = vmatpush1.bf16.msra.mxu0 %v339
    %420 = vmatprep.subr.bf16.mxu0 %v338
    %421 = vmatpush1.bf16.msra.mxu0 %v337
    %422 = vmatprep.subr.bf16.mxu0 %v336
    %423 = vmatpush1.bf16.msra.mxu0 %v335
    %424 = vmatprep.subr.bf16.mxu0 %v334
    %425 = vmatpush1.bf16.msra.mxu0 %v333
    %426 = vmatprep.subr.bf16.mxu0 %v332
    %427 = vmatpush1.bf16.msra.mxu0 %v331
    %428 = vmatprep.subr.bf16.mxu0 %v330
    %429 = vmatpush1.bf16.msra.mxu0 %v329
    %430 = vmatprep.subr.bf16.mxu0 %v328
    %431 = vmatpush1.bf16.msra.mxu0 %v327
    %432 = vmatprep.subr.bf16.mxu0 %v326
    %433 = vmatpush1.bf16.msra.mxu0 %v325
    %434 = vmatprep.subr.bf16.mxu0 0
    %435 = vmatpush2.bf16.msra.mxu0 0
    %436 = vmatprep.subr.bf16.mxu0 0
    %437 = vmatpush2.bf16.msra.mxu0 0
    %438 = vmatprep.subr.bf16.mxu0 0
    %439 = vmatpush2.bf16.msra.mxu0 0
    %440 = vmatprep.subr.bf16.mxu0 0
    %441 = vmatpush2.bf16.msra.mxu0 0
    %442 = vmatprep.subr.bf16.mxu0 0
    %443 = vmatpush2.bf16.msra.mxu0 0
    %444 = vmatprep.subr.bf16.mxu0 0
    %445 = vmatpush2.bf16.msra.mxu0 0
    %446 = vmatprep.subr.bf16.mxu0 0
    %447 = vmatpush2.bf16.msra.mxu0 0
    %448 = vmatprep.subr.bf16.mxu0 0
    %449 = vmatpush2.bf16.msra.mxu0 0
    %450 = vmatprep.mubr.bf16.mxu0 0
    %451 = vmatmul.mubr.bf16.gmra.mxu0 %v416
    %v452 = vpop.f32.mrf.mxu0
    %v453 = vadd.f32 0.0, %v452
    %v454 = vpop.f32.mrf.mxu0
    %v455 = vadd.f32 0.0, %v454
    %v456 = vpop.f32.mrf.mxu0
    %v457 = vadd.f32 0.0, %v456
    %v458 = vpop.f32.mrf.mxu0
    %v459 = vadd.f32 0.0, %v458
    %460 = vdwg.mxu0
    %v461 = vadd.f32 %v241, %v453
    %v462 = vadd.f32 %v242, %v455
    %v463 = vadd.f32 %v243, %v457
    %v464 = vadd.f32 %v244, %v459
    %s465 = scalar_lea.vmem [#allocation2], 256
    %v466 = vld [vmem:[%s465] sm:$0xff]
    %v467 = vld [vmem:[%s465 + $0x8] sm:$0xff]
    %v468 = vld [vmem:[%s465 + $0x10] sm:$0xff]
    %v469 = vld [vmem:[%s465 + $0x18] sm:$0xff]
    %v470 = vld [vmem:[%s465 + $0x20] sm:$0xff]
    %v471 = vld [vmem:[%s465 + $0x28] sm:$0xff]
    %v472 = vld [vmem:[%s465 + $0x30] sm:$0xff]
    %v473 = vld [vmem:[%s465 + $0x38] sm:$0xff]
    %v474 = vld [vmem:[%s465 + $0x40] sm:$0xff]
    %v475 = vld [vmem:[%s465 + $0x48] sm:$0xff]
    %v476 = vld [vmem:[%s465 + $0x50] sm:$0xff]
    %v477 = vld [vmem:[%s465 + $0x58] sm:$0xff]
    %v478 = vld [vmem:[%s465 + $0x60] sm:$0xff]
    %v479 = vld [vmem:[%s465 + $0x68] sm:$0xff]
    %v480 = vld [vmem:[%s465 + $0x70] sm:$0xff]
    %v481 = vld [vmem:[%s465 + $0x78] sm:$0xff]
    %vm484 = vcmask 1046528
    %v485 = vrot.slane %v69, 1
    %v486 = vrot.slane %v262, 1
    %v487 = vsel %vm484, %v485, %v486
    %v505 = vunpack.c.l.b16 %v466
    %v506 = vunpack.c.h.b16 %v466
    %v507 = vunpack.c.l.b16 %v467
    %v508 = vunpack.c.h.b16 %v467
    %v509 = vunpack.c.l.b16 %v468
    %v510 = vunpack.c.h.b16 %v468
    %v511 = vunpack.c.l.b16 %v469
    %v512 = vunpack.c.h.b16 %v469
    %v513 = vunpack.c.l.b16 %v470
    %v514 = vunpack.c.h.b16 %v470
    %v515 = vunpack.c.l.b16 %v471
    %v516 = vunpack.c.h.b16 %v471
    %v517 = vunpack.c.l.b16 %v472
    %v518 = vunpack.c.h.b16 %v472
    %v519 = vunpack.c.l.b16 %v473
    %v520 = vunpack.c.h.b16 %v473
    %v521 = vunpack.c.l.b16 %v474
    %v522 = vunpack.c.h.b16 %v474
    %v523 = vunpack.c.l.b16 %v475
    %v524 = vunpack.c.h.b16 %v475
    %v525 = vunpack.c.l.b16 %v476
    %v526 = vunpack.c.h.b16 %v476
    %v527 = vunpack.c.l.b16 %v477
    %v528 = vunpack.c.h.b16 %v477
    %v529 = vunpack.c.l.b16 %v478
    %v530 = vunpack.c.h.b16 %v478
    %v531 = vunpack.c.l.b16 %v479
    %v532 = vunpack.c.h.b16 %v479
    %v533 = vunpack.c.l.b16 %v480
    %v534 = vunpack.c.h.b16 %v480
    %v535 = vunpack.c.l.b16 %v481
    %v536 = vunpack.c.h.b16 %v481
    %v537 = vpack.c.b16 %v507, %v505
    %v538 = vpack.c.b16 %v508, %v506
    %v539 = vpack.c.b16 %v511, %v509
    %v540 = vpack.c.b16 %v512, %v510
    %v541 = vpack.c.b16 %v515, %v513
    %v542 = vpack.c.b16 %v516, %v514
    %v543 = vpack.c.b16 %v519, %v517
    %v544 = vpack.c.b16 %v520, %v518
    %v545 = vpack.c.b16 %v523, %v521
    %v546 = vpack.c.b16 %v524, %v522
    %v547 = vpack.c.b16 %v527, %v525
    %v548 = vpack.c.b16 %v528, %v526
    %v549 = vpack.c.b16 %v531, %v529
    %v550 = vpack.c.b16 %v532, %v530
    %v551 = vpack.c.b16 %v535, %v533
    %v552 = vpack.c.b16 %v536, %v534
    %569 = vmatprep.subr.bf16.mxu0 %v552
    %570 = vmatpush1.bf16.msra.mxu0 %v551
    %571 = vmatprep.subr.bf16.mxu0 %v550
    %572 = vmatpush1.bf16.msra.mxu0 %v549
    %573 = vmatprep.subr.bf16.mxu0 %v548
    %574 = vmatpush1.bf16.msra.mxu0 %v547
    %575 = vmatprep.subr.bf16.mxu0 %v546
    %576 = vmatpush1.bf16.msra.mxu0 %v545
    %577 = vmatprep.subr.bf16.mxu0 %v544
    %578 = vmatpush1.bf16.msra.mxu0 %v543
    %579 = vmatprep.subr.bf16.mxu0 %v542
    %580 = vmatpush1.bf16.msra.mxu0 %v541
    %581 = vmatprep.subr.bf16.mxu0 %v540
    %582 = vmatpush1.bf16.msra.mxu0 %v539
    %583 = vmatprep.subr.bf16.mxu0 %v538
    %584 = vmatpush1.bf16.msra.mxu0 %v537
    %585 = vmatprep.subr.bf16.mxu0 0
    %586 = vmatpush2.bf16.msra.mxu0 0
    %587 = vmatprep.subr.bf16.mxu0 0
    %588 = vmatpush2.bf16.msra.mxu0 0
    %589 = vmatprep.subr.bf16.mxu0 0
    %590 = vmatpush2.bf16.msra.mxu0 0
    %591 = vmatprep.subr.bf16.mxu0 0
    %592 = vmatpush2.bf16.msra.mxu0 0
    %593 = vmatprep.subr.bf16.mxu0 0
    %594 = vmatpush2.bf16.msra.mxu0 0
    %595 = vmatprep.subr.bf16.mxu0 0
    %596 = vmatpush2.bf16.msra.mxu0 0
    %597 = vmatprep.subr.bf16.mxu0 0
    %598 = vmatpush2.bf16.msra.mxu0 0
    %599 = vmatprep.subr.bf16.mxu0 0
    %600 = vmatpush2.bf16.msra.mxu0 0
    %601 = vmatprep.mubr.bf16.mxu0 0
    %602 = vmatmul.mubr.bf16.gmra.mxu0 %v487
    %v603 = vpop.f32.mrf.mxu0
    %v604 = vadd.f32 0.0, %v603
    %v605 = vpop.f32.mrf.mxu0
    %v606 = vadd.f32 0.0, %v605
    %v607 = vpop.f32.mrf.mxu0
    %v608 = vadd.f32 0.0, %v607
    %v609 = vpop.f32.mrf.mxu0
    %v610 = vadd.f32 0.0, %v609
    %611 = vdwg.mxu0
    %v612 = vadd.f32 %v400, %v604
    %v613 = vadd.f32 %v401, %v606
    %v614 = vadd.f32 %v402, %v608
    %v615 = vadd.f32 %v403, %v610
    %v618 = vrot.slane %v197, 1
    %v619 = vrot.slane %v404, 1
    %v620 = vsel %vm484, %v618, %v619
    %622 = vmatprep.subr.bf16.mxu0 %v552
    %623 = vmatpush1.bf16.msra.mxu0 %v551
    %624 = vmatprep.subr.bf16.mxu0 %v550
    %625 = vmatpush1.bf16.msra.mxu0 %v549
    %626 = vmatprep.subr.bf16.mxu0 %v548
    %627 = vmatpush1.bf16.msra.mxu0 %v547
    %628 = vmatprep.subr.bf16.mxu0 %v546
    %629 = vmatpush1.bf16.msra.mxu0 %v545
    %630 = vmatprep.subr.bf16.mxu0 %v544
    %631 = vmatpush1.bf16.msra.mxu0 %v543
    %632 = vmatprep.subr.bf16.mxu0 %v542
    %633 = vmatpush1.bf16.msra.mxu0 %v541
    %634 = vmatprep.subr.bf16.mxu0 %v540
    %635 = vmatpush1.bf16.msra.mxu0 %v539
    %636 = vmatprep.subr.bf16.mxu0 %v538
    %637 = vmatpush1.bf16.msra.mxu0 %v537
    %638 = vmatprep.subr.bf16.mxu0 0
    %639 = vmatpush2.bf16.msra.mxu0 0
    %640 = vmatprep.subr.bf16.mxu0 0
    %641 = vmatpush2.bf16.msra.mxu0 0
    %642 = vmatprep.subr.bf16.mxu0 0
    %643 = vmatpush2.bf16.msra.mxu0 0
    %644 = vmatprep.subr.bf16.mxu0 0
    %645 = vmatpush2.bf16.msra.mxu0 0
    %646 = vmatprep.subr.bf16.mxu0 0
    %647 = vmatpush2.bf16.msra.mxu0 0
    %648 = vmatprep.subr.bf16.mxu0 0
    %649 = vmatpush2.bf16.msra.mxu0 0
    %650 = vmatprep.subr.bf16.mxu0 0
    %651 = vmatpush2.bf16.msra.mxu0 0
    %652 = vmatprep.subr.bf16.mxu0 0
    %653 = vmatpush2.bf16.msra.mxu0 0
    %654 = vmatprep.mubr.bf16.mxu0 0
    %655 = vmatmul.mubr.bf16.gmra.mxu0 %v620
    %v656 = vpop.f32.mrf.mxu0
    %v657 = vadd.f32 0.0, %v656
    %v658 = vpop.f32.mrf.mxu0
    %v659 = vadd.f32 0.0, %v658
    %v660 = vpop.f32.mrf.mxu0
    %v661 = vadd.f32 0.0, %v660
    %v662 = vpop.f32.mrf.mxu0
    %v663 = vadd.f32 0.0, %v662
    %664 = vdwg.mxu0
    %v665 = vadd.f32 %v461, %v657
    %v666 = vadd.f32 %v462, %v659
    %v667 = vadd.f32 %v463, %v661
    %v668 = vadd.f32 %v464, %v663
    %v669 = vxor.u32 %v613, 2147483648
    %v670 = vxor.u32 %v615, 2147483648
    %v671 = vmul.f32 %v669, 1.442695
    %v672 = vpow.pop %v671
    %v673 = vmul.f32 %v670, 1.442695
    %v674 = vpow.pop %v673
    %v675 = vadd.f32 %v672, 1.0
    %v676 = vadd.f32 %v674, 1.0
    %v677 = vrcp.pop %v675
    %v678 = vmul.f32 1.0, %v677
    %v679 = vrcp.pop %v676
    %v680 = vmul.f32 1.0, %v679
    %v681 = vmul.f32 %v612, %v678
    %v682 = vmul.f32 %v614, %v680
    %vm686 = vcmask 1046528
    %v687 = vrot.slane %v46, 1
    %v688 = vrot.slane %v47, 1
    %v689 = vsel %vm686, %v687, %v688
    %v690 = vrot.slane %v48, 1
    %v691 = vsel %vm686, %v688, %v690
    %v694 = vadd.f32 %v681, %v689
    %v695 = vadd.f32 %v682, %v691
    %696 = vst [vmem:[#allocation5] sm:$0xff] %v694
    %697 = vst [vmem:[#allocation5 + $0x8] sm:$0xff] %v695
    %v698 = vadd.f32 %v694, %v695
    %v699 = vrot.slane %v698, 4
    %v700 = vadd.f32 %v698, %v699
    %v701 = vrot.slane %v700, 2
    %v702 = vadd.f32 %v700, %v701
    %v703 = vrot.slane %v702, 1
    %v704 = vadd.f32 %v702, %v703
    %v705 = vadd.f32 %v704, 0.0
    %v706 = vmul.f32 %v694, %v694
    %v707 = vmul.f32 %v695, %v695
    %v708 = vadd.f32 %v706, %v707
    %v709 = vrot.slane %v708, 4
    %v710 = vadd.f32 %v708, %v709
    %v711 = vrot.slane %v710, 2
    %v712 = vadd.f32 %v710, %v711
    %v713 = vrot.slane %v712, 1
    %v714 = vadd.f32 %v712, %v713
    %v715 = vadd.f32 %v714, 0.0
    %v716 = vxor.u32 %v666, 2147483648
    %v717 = vxor.u32 %v668, 2147483648
    %v718 = vmul.f32 %v716, 1.442695
    %v719 = vpow.pop %v718
    %v720 = vmul.f32 %v717, 1.442695
    %v721 = vpow.pop %v720
    %v722 = vadd.f32 %v719, 1.0
    %v723 = vadd.f32 %v721, 1.0
    %v724 = vrcp.pop %v722
    %v725 = vmul.f32 1.0, %v724
    %v726 = vrcp.pop %v723
    %v727 = vmul.f32 1.0, %v726
    %v728 = vmul.f32 %v665, %v725
    %v729 = vmul.f32 %v667, %v727
    %v733 = vrot.slane %v50, 1
    %v734 = vrot.slane %v51, 1
    %v735 = vsel %vm686, %v733, %v734
    %v736 = vrot.slane %v52, 1
    %v737 = vsel %vm686, %v734, %v736
    %v740 = vadd.f32 %v728, %v735
    %v741 = vadd.f32 %v729, %v737
    %s742 = scalar_lea.vmem [#allocation5], 16
    %743 = vst [vmem:[%s742] sm:$0xff] %v740
    %744 = vst [vmem:[%s742 + $0x8] sm:$0xff] %v741
    %v745 = vadd.f32 %v740, %v741
    %v746 = vrot.slane %v745, 4
    %v747 = vadd.f32 %v745, %v746
    %v748 = vrot.slane %v747, 2
    %v749 = vadd.f32 %v747, %v748
    %v750 = vrot.slane %v749, 1
    %v751 = vadd.f32 %v749, %v750
    %v752 = vadd.f32 %v705, %v751
    %v753 = vmul.f32 %v740, %v740
    %v754 = vmul.f32 %v741, %v741
    %v755 = vadd.f32 %v753, %v754
    %v756 = vrot.slane %v755, 4
    %v757 = vadd.f32 %v755, %v756
    %v758 = vrot.slane %v757, 2
    %v759 = vadd.f32 %v757, %v758
    %v760 = vrot.slane %v759, 1
    %v761 = vadd.f32 %v759, %v760
    %v762 = vadd.f32 %v715, %v761
    %763 = vst [vmem:[#allocation6] sm:$0x1] %v752
    %764 = vst [vmem:[#allocation8] sm:$0x1] %v762
    // Predicated region
    $region18: #{tpu_custom_call.1} parent=1 // pred_check
      _
    $region19: #{tpu_custom_call.1} parent=1 // pred_check_branch
      %766 = sbr.rel (0) target = $region21
    $region20: #{tpu_custom_call.1} parent=1 // pred_region
      %s768 = ssub.s32 512, 512
      %769 = vsyncadd [#allocation4], %s768
      %s770 = sshll.u32 [#allocation5], 4
      %s771 = int_to_ptr.vmem [resolvable:$true] %s770
      %776 = dma.vmem_to_hbm [thread:$0]  %s771, 512, %s3, [#allocation4], 128, 128, 8
    $region21: #{tpu_custom_call.1} parent=1 // pred_fallthru
      _
    // Predicated region
    $region22: #{tpu_custom_call.1} parent=1 // pred_check
      _
    $region23: #{tpu_custom_call.1} parent=1 // pred_check_branch
      %778 = sbr.rel (0) target = $region25
    $region24: #{tpu_custom_call.1} parent=1 // pred_region
      %s780 = ssub.s32 16, 16
      %781 = vsyncadd [#allocation7], %s780
      %s783 = sshll.u32 [#allocation6], 4
      %s784 = int_to_ptr.vmem [resolvable:$true] %s783
      %786 = dma.vmem_to_hbm [thread:$0]  %s784, 16, %s4, [#allocation7]
    $region25: #{tpu_custom_call.1} parent=1 // pred_fallthru
      _
    // Predicated region
    $region26: #{tpu_custom_call.1} parent=1 // pred_check
      _
    $region27: #{tpu_custom_call.1} parent=1 // pred_check_branch
      %788 = sbr.rel (0) target = $region29
    $region28: #{tpu_custom_call.1} parent=1 // pred_region
      %s790 = ssub.s32 16, 16
      %791 = vsyncadd [#allocation7], %s790
      %s793 = sshll.u32 [#allocation8], 4
      %s794 = int_to_ptr.vmem [resolvable:$true] %s793
      %796 = dma.vmem_to_hbm [thread:$0]  %s794, 16, %s5, [#allocation7]
    $region29: #{tpu_custom_call.1} parent=1 // pred_fallthru
      _
    // Predicated region
    $region30: #{tpu_custom_call.1} parent=1 // pred_check
      _
    $region31: #{tpu_custom_call.1} parent=1 // pred_check_branch
      %798 = sbr.rel (0) target = $region33
    $region32: #{tpu_custom_call.1} parent=1 // pred_region
      %799 = dma.done [#allocation4], 512
    $region33: #{tpu_custom_call.1} parent=1 // pred_fallthru
      _
    // Predicated region
    $region34: #{tpu_custom_call.1} parent=1 // pred_check
      _
    $region35: #{tpu_custom_call.1} parent=1 // pred_check_branch
      %801 = sbr.rel (0) target = $region37
    $region36: #{tpu_custom_call.1} parent=1 // pred_region
      %802 = dma.done [#allocation7], 16
    $region37: #{tpu_custom_call.1} parent=1 // pred_fallthru
      _
    // Predicated region
    $region38: #{tpu_custom_call.1} parent=1 // pred_check
      _
    $region39: #{tpu_custom_call.1} parent=1 // pred_check_branch
      %804 = sbr.rel (0) target = $region41
    $region40: #{tpu_custom_call.1} parent=1 // pred_region
      %805 = dma.done [#allocation7], 16
    $region41: #{tpu_custom_call.1} parent=1 // pred_fallthru
      _
    %806 = vsyncpa [#allocation3], 1
    %807 = vsyncpa [#allocation4], 1
    %808 = vsyncpa [#allocation7], 1

</llo_original>
